<compile_context>
chip_gen: v6e
topology: v6e:2x2x1
jax: 0.10.0
libtpu: 0.0.40
codegen_flags: <defaults>
</compile_context>

<pallas_src>
import functools

import jax
import jax.numpy as jnp
from jax import lax
from jax.experimental import pallas as pl
from jax.experimental.pallas import tpu as pltpu

KERNEL_SIZES = (3, 5, 7)

CT_TARGET = 8                      # channels per grid step (capped by block bytes)
MAX_BLOCK_BYTES = 4 * 1024 * 1024  # per-block DMA cap
ACC_ELEMS = 8192                   # ~32 KiB f32 accumulator per row strip


def _split_channels(num_chan, num_groups):
    split = [num_chan // num_groups for _ in range(num_groups)]
    split[0] += num_chan - sum(split)
    return split


def _shift_cols(rows, s):
    """y[:, w] = rows[:, w + s] where w+s is in range, else 0.  Static s.

    Lowered as a lane rotate + select against zeros (in-register), so the tap
    loop issues no lane-misaligned VMEM loads.
    """
    r, w = rows.shape
    if s == 0:
        return rows
    if abs(s) >= w:
        return jnp.zeros_like(rows)
    pad = jnp.zeros((r, abs(s)), rows.dtype)
    if s > 0:
        return jnp.concatenate([rows[:, s:], pad], axis=1)
    return jnp.concatenate([pad, rows[:, : w + s]], axis=1)


# ---------------------------------------------------------------------------
# Pallas kernel: one (batch, channel-tile) block of one kernel-size group.
#   x_ref  : (Ct, H, W)        VMEM  input channel tile
#   w_ref  : (c_gp, K*K)       SMEM  per-channel taps (row-major per channel)
#   o_ref  : (Ct, H, W)        VMEM  output channel tile
#   xp_ref : (H + 2*p, W)      VMEM  f32 rows-only padded plane (per channel)
# ---------------------------------------------------------------------------
def _mixconv_group_kernel(x_ref, w_ref, o_ref, xp_ref, *,
                          K, p, H, W, Ct, TH, n_strips):
    ct = pl.program_id(1)

    # Zero only the halo row bands; the interior is overwritten per channel
    # below and never touches the halo, so the plane is written exactly once.
    if p > 0:
        xp_ref[:p, :] = jnp.zeros((p, W), jnp.float32)
        xp_ref[p + H:, :] = jnp.zeros((p, W), jnp.float32)

    def channel_body(c, carry):
        c_glob = ct * Ct + c
        # Rows-only padded copy (lane axis stays aligned).
        xp_ref[p:p + H, :] = x_ref[c].astype(jnp.float32)

        def strip_body(s, carry2):
            # Clamped start: the last strip may overlap (recompute, never OOB).
            row0 = jnp.minimum(s * TH, H - TH)
            acc = jnp.zeros((TH, W), jnp.float32)  # stays in vregs across taps
            for dy in range(K):
                # One row-strip load per dy (hoisted out of the dx loop).
                rows = xp_ref[pl.ds(row0 + dy, TH), :]
                for dx in range(K):
                    tap = w_ref[c_glob, dy * K + dx]        # SMEM scalar
                    acc = acc + _shift_cols(rows, dx - p) * tap
            o_ref[c, pl.ds(row0, TH), :] = acc.astype(o_ref.dtype)
            return carry2

        return lax.fori_loop(0, n_strips, strip_body, carry)

    lax.fori_loop(0, Ct, channel_body, 0)


def _mixconv_group(xg, wg, K):
    """Depthwise stride-1 'same' conv of one kernel-size group.

    xg: (N, c_g, H, W); wg: (c_g, 1, K, K). Returns (N, c_g, H, W).
    """
    N, c_g, H, W = xg.shape
    p = (K - 1) // 2
    itemsize = xg.dtype.itemsize

    # Channel tile: big DMA blocks, capped so 2x(in)+2x(out)+scratch fits VMEM
    # comfortably on all generations (v7x has 64 MiB / TC).
    Ct = max(1, min(CT_TARGET, c_g, MAX_BLOCK_BYTES // max(1, H * W * itemsize)))
    c_gp = -(-c_g // Ct) * Ct
    if c_gp != c_g:
        xg = jnp.pad(xg, ((0, 0), (0, c_gp - c_g), (0, 0), (0, 0)))
        wg = jnp.pad(wg, ((0, c_gp - c_g), (0, 0), (0, 0), (0, 0)))
    w2 = wg.reshape(c_gp, K * K).astype(jnp.float32)

    # Row strips sized so the f32 accumulator stays ~<= 32 KiB (in vregs),
    # balanced so the (clamped) last strip overlaps as little as possible.
    th_max = min(H, max(8, (ACC_ELEMS // max(1, W)) // 8 * 8))
    n_strips = -(-H // th_max)
    TH = -(-H // n_strips)
    TH = min(H, -(-TH // 8) * 8)

    kernel = functools.partial(_mixconv_group_kernel, K=K, p=p, H=H, W=W,
                               Ct=Ct, TH=TH, n_strips=n_strips)

    block_bytes = Ct * H * W * itemsize
    scratch_bytes = (H + 2 * p) * W * 4
    needed = 4 * block_bytes + scratch_bytes + (1 << 20)
    vmem_limit = int(min(max(needed, 32 << 20), 48 << 20))

    out = pl.pallas_call(
        kernel,
        out_shape=jax.ShapeDtypeStruct((N, c_gp, H, W), xg.dtype),
        grid_spec=pltpu.PrefetchScalarGridSpec(
            num_scalar_prefetch=0,
            grid=(N, c_gp // Ct),
            in_specs=[
                pl.BlockSpec((None, Ct, H, W), lambda n, ct: (n, ct, 0, 0)),
                pl.BlockSpec(memory_space=pltpu.MemorySpace.SMEM),   # taps
            ],
            out_specs=pl.BlockSpec((None, Ct, H, W), lambda n, ct: (n, ct, 0, 0)),
            scratch_shapes=[
                pltpu.VMEM((H + 2 * p, W), jnp.float32),
            ],
        ),
        compiler_params=pltpu.CompilerParams(
            dimension_semantics=("parallel", "parallel"),
            vmem_limit_bytes=vmem_limit,
        ),
    )(xg, w2)

    return out[:, :c_g] if c_gp != c_g else out


def mixconv_forward(x, group_weights, kernel_sizes=KERNEL_SIZES):
    """x: (N, C, H, W) NCHW; group_weights[g]: (c_g, 1, K_g, K_g)."""
    N, C, H, W = x.shape
    splits = _split_channels(C, len(kernel_sizes))
    outs, start = [], 0
    for wg, c_g, K in zip(group_weights, splits, kernel_sizes):
        xg = x[:, start:start + c_g]
        outs.append(_mixconv_group(xg, wg, K))
        start += c_g
    return jnp.concatenate(outs, axis=1)


# ---------------------------------------------------------------------------
# Parameter construction (deterministic) + plain-JAX reference
# ---------------------------------------------------------------------------
def make_params(key, in_channels, kernel_sizes=KERNEL_SIZES):
    splits = _split_channels(in_channels, len(kernel_sizes))
    group_weights = []
    for c, k in zip(splits, kernel_sizes):
        key, sub = jax.random.split(key)
        group_weights.append(jax.random.normal(sub, (c, 1, k, k), jnp.float32) * 0.1)
    return splits, group_weights


def reference_forward(x_nchw, group_weights, splits):
    outs, start = [], 0
    for w, c in zip(group_weights, splits):
        k = w.shape[-1]
        p = (k - 1) // 2
        xg = x_nchw[:, start:start + c]
        outs.append(lax.conv_general_dilated(
            xg, w, window_strides=(1, 1), padding=[(p, p), (p, p)],
            feature_group_count=c,
            dimension_numbers=("NCHW", "OIHW", "NCHW")))
        start += c
    return jnp.concatenate(outs, axis=1)


if __name__ == "__main__":
    N, C, H, W = 2, 4, 16, 16
    key = jax.random.PRNGKey(0)
    key, kx = jax.random.split(key)
    x = jax.random.normal(kx, (N, C, H, W), jnp.float32)

    splits, group_weights = make_params(key, C)

    out = mixconv_forward(x, group_weights)
    out = jax.block_until_ready(out)

    ref = reference_forward(x, group_weights, splits)
    assert out.shape == (N, C, H, W)
    assert jnp.allclose(out, ref, atol=1e-5, rtol=1e-5), (
        float(jnp.max(jnp.abs(out - ref))))

    print("KERNEL_OK")
</pallas_src>

<mosaic_0001>
module attributes {stable_mosaic.version = 11 : i64} {
  func.func @_mixconv_group_kernel(%arg0: i32, %arg1: i32, %arg2: memref<1x2x16x16xf32, #tpu.memory_space<vmem>>, %arg3: memref<2x9xf32, #tpu.memory_space<smem>>, %arg4: memref<1x2x16x16xf32, #tpu.memory_space<vmem>>, %arg5: memref<18x16xf32, #tpu.memory_space<vmem>>) attributes {dimension_semantics = [#tpu.dimension_semantics<parallel>, #tpu.dimension_semantics<parallel>], iteration_bounds = array<i64: 2, 1>, scalar_prefetch = 0 : i64, scratch_operands = 1 : i64, tpu.core_type = #tpu.core_type<tc>, window_params = [{transform_indices = @transform_0, window_bounds = array<i64: 1, 2, 16, 16>}, {transform_indices = @transform_1, window_bounds = array<i64: 2, 9>}, {transform_indices = @transform_2, window_bounds = array<i64: 1, 2, 16, 16>}]} {
    %cst = arith.constant 0.000000e+00 : f32
    %0 = vector.broadcast %cst : f32 to vector<1x16xf32>
    %c0 = arith.constant 0 : index
    %c0_0 = arith.constant 0 : index
    %1 = vector.load %arg5[%c0, %c0_0] : memref<18x16xf32, #tpu.memory_space<vmem>>, vector<1x16xf32>
    tpu.vector_store %arg5[%c0, %c0_0], %0 {strides = array<i32>} : memref<18x16xf32, #tpu.memory_space<vmem>>, vector<1x16xf32>,
    %cst_1 = arith.constant 0.000000e+00 : f32
    %2 = vector.broadcast %cst_1 : f32 to vector<1x16xf32>
    %c17 = arith.constant 17 : index
    %c0_2 = arith.constant 0 : index
    %3 = vector.load %arg5[%c17, %c0_2] : memref<18x16xf32, #tpu.memory_space<vmem>>, vector<1x16xf32>
    tpu.vector_store %arg5[%c17, %c0_2], %2 {strides = array<i32>} : memref<18x16xf32, #tpu.memory_space<vmem>>, vector<1x16xf32>,
    %c0_i32 = arith.constant 0 : i32
    %c2_i32 = arith.constant 2 : i32
    %4 = arith.addi %c0_i32, %c2_i32 : i32
    %c1_i32 = arith.constant 1 : i32
    scf.for %arg6 = %c0_i32 to %4 step %c1_i32  : i32 {
      %c2_i32_4 = arith.constant 2 : i32
      %5 = arith.muli %arg1, %c2_i32_4 : i32
      %6 = arith.addi %5, %arg6 : i32
      %c0_5 = arith.constant 0 : index
      %7 = arith.index_cast %arg6 : i32 to index
      %c0_6 = arith.constant 0 : index
      %c0_7 = arith.constant 0 : index
      %8 = vector.load %arg2[%c0_5, %7, %c0_6, %c0_7] : memref<1x2x16x16xf32, #tpu.memory_space<vmem>>, vector<1x1x16x16xf32>
      %9 = vector.shape_cast %8 : vector<1x1x16x16xf32> to vector<16x16xf32>
      %c1 = arith.constant 1 : index
      %c0_8 = arith.constant 0 : index
      %10 = vector.load %arg5[%c1, %c0_8] : memref<18x16xf32, #tpu.memory_space<vmem>>, vector<16x16xf32>
      tpu.vector_store %arg5[%c1, %c0_8], %9 {strides = array<i32>} : memref<18x16xf32, #tpu.memory_space<vmem>>, vector<16x16xf32>,
      %c0_i32_9 = arith.constant 0 : i32
      %c16_i32 = arith.constant 16 : i32
      %11 = arith.muli %c0_i32_9, %c16_i32 : i32
      %c0_i32_10 = arith.constant 0 : i32
      %12 = arith.minsi %11, %c0_i32_10 : i32
      %cst_11 = arith.constant 0.000000e+00 : f32
      %13 = vector.broadcast %cst_11 : f32 to vector<16x16xf32>
      %c0_i32_12 = arith.constant 0 : i32
      %14 = arith.addi %12, %c0_i32_12 : i32
      %15 = arith.index_cast %14 : i32 to index
      %c0_13 = arith.constant 0 : index
      %16 = vector.load %arg5[%15, %c0_13] : memref<18x16xf32, #tpu.memory_space<vmem>>, vector<16x16xf32>
      %17 = arith.index_cast %6 : i32 to index
      %c0_14 = arith.constant 0 : index
      %18 = memref.load %arg3[%17, %c0_14] : memref<2x9xf32, #tpu.memory_space<smem>>
      %cst_15 = arith.constant 0.000000e+00 : f32
      %19 = vector.broadcast %cst_15 : f32 to vector<16x1xf32>
      %20 = vector.extract_strided_slice %16 {offsets = [0, 0], sizes = [16, 15], strides = [1, 1]} : vector<16x16xf32> to vector<16x15xf32>
      %21 = tpu.concatenate %19, %20 in 1 : vector<16x1xf32>, vector<16x15xf32> -> vector<16x16xf32>
      %22 = vector.broadcast %18 : f32 to vector<16x16xf32>
      %23 = arith.mulf %21, %22 : vector<16x16xf32>
      %24 = arith.addf %13, %23 : vector<16x16xf32>
      %25 = arith.index_cast %6 : i32 to index
      %c1_16 = arith.constant 1 : index
      %26 = memref.load %arg3[%25, %c1_16] : memref<2x9xf32, #tpu.memory_space<smem>>
      %27 = vector.broadcast %26 : f32 to vector<16x16xf32>
      %28 = arith.mulf %16, %27 : vector<16x16xf32>
      %29 = arith.addf %24, %28 : vector<16x16xf32>
      %30 = arith.index_cast %6 : i32 to index
      %c2 = arith.constant 2 : index
      %31 = memref.load %arg3[%30, %c2] : memref<2x9xf32, #tpu.memory_space<smem>>
      %cst_17 = arith.constant 0.000000e+00 : f32
      %32 = vector.broadcast %cst_17 : f32 to vector<16x1xf32>
      %33 = vector.extract_strided_slice %16 {offsets = [0, 1], sizes = [16, 15], strides = [1, 1]} : vector<16x16xf32> to vector<16x15xf32>
      %34 = tpu.concatenate %33, %32 in 1 : vector<16x15xf32>, vector<16x1xf32> -> vector<16x16xf32>
      %35 = vector.broadcast %31 : f32 to vector<16x16xf32>
      %36 = arith.mulf %34, %35 : vector<16x16xf32>
      %37 = arith.addf %29, %36 : vector<16x16xf32>
      %c1_i32_18 = arith.constant 1 : i32
      %38 = arith.addi %12, %c1_i32_18 : i32
      %39 = arith.index_cast %38 : i32 to index
      %c0_19 = arith.constant 0 : index
      %40 = vector.load %arg5[%39, %c0_19] : memref<18x16xf32, #tpu.memory_space<vmem>>, vector<16x16xf32>
      %41 = arith.index_cast %6 : i32 to index
      %c3 = arith.constant 3 : index
      %42 = memref.load %arg3[%41, %c3] : memref<2x9xf32, #tpu.memory_space<smem>>
      %cst_20 = arith.constant 0.000000e+00 : f32
      %43 = vector.broadcast %cst_20 : f32 to vector<16x1xf32>
      %44 = vector.extract_strided_slice %40 {offsets = [0, 0], sizes = [16, 15], strides = [1, 1]} : vector<16x16xf32> to vector<16x15xf32>
      %45 = tpu.concatenate %43, %44 in 1 : vector<16x1xf32>, vector<16x15xf32> -> vector<16x16xf32>
      %46 = vector.broadcast %42 : f32 to vector<16x16xf32>
      %47 = arith.mulf %45, %46 : vector<16x16xf32>
      %48 = arith.addf %37, %47 : vector<16x16xf32>
      %49 = arith.index_cast %6 : i32 to index
      %c4 = arith.constant 4 : index
      %50 = memref.load %arg3[%49, %c4] : memref<2x9xf32, #tpu.memory_space<smem>>
      %51 = vector.broadcast %50 : f32 to vector<16x16xf32>
      %52 = arith.mulf %40, %51 : vector<16x16xf32>
      %53 = arith.addf %48, %52 : vector<16x16xf32>
      %54 = arith.index_cast %6 : i32 to index
      %c5 = arith.constant 5 : index
      %55 = memref.load %arg3[%54, %c5] : memref<2x9xf32, #tpu.memory_space<smem>>
      %cst_21 = arith.constant 0.000000e+00 : f32
      %56 = vector.broadcast %cst_21 : f32 to vector<16x1xf32>
      %57 = vector.extract_strided_slice %40 {offsets = [0, 1], sizes = [16, 15], strides = [1, 1]} : vector<16x16xf32> to vector<16x15xf32>
      %58 = tpu.concatenate %57, %56 in 1 : vector<16x15xf32>, vector<16x1xf32> -> vector<16x16xf32>
      %59 = vector.broadcast %55 : f32 to vector<16x16xf32>
      %60 = arith.mulf %58, %59 : vector<16x16xf32>
      %61 = arith.addf %53, %60 : vector<16x16xf32>
      %c2_i32_22 = arith.constant 2 : i32
      %62 = arith.addi %12, %c2_i32_22 : i32
      %63 = arith.index_cast %62 : i32 to index
      %c0_23 = arith.constant 0 : index
      %64 = vector.load %arg5[%63, %c0_23] : memref<18x16xf32, #tpu.memory_space<vmem>>, vector<16x16xf32>
      %65 = arith.index_cast %6 : i32 to index
      %c6 = arith.constant 6 : index
      %66 = memref.load %arg3[%65, %c6] : memref<2x9xf32, #tpu.memory_space<smem>>
      %cst_24 = arith.constant 0.000000e+00 : f32
      %67 = vector.broadcast %cst_24 : f32 to vector<16x1xf32>
      %68 = vector.extract_strided_slice %64 {offsets = [0, 0], sizes = [16, 15], strides = [1, 1]} : vector<16x16xf32> to vector<16x15xf32>
      %69 = tpu.concatenate %67, %68 in 1 : vector<16x1xf32>, vector<16x15xf32> -> vector<16x16xf32>
      %70 = vector.broadcast %66 : f32 to vector<16x16xf32>
      %71 = arith.mulf %69, %70 : vector<16x16xf32>
      %72 = arith.addf %61, %71 : vector<16x16xf32>
      %73 = arith.index_cast %6 : i32 to index
      %c7 = arith.constant 7 : index
      %74 = memref.load %arg3[%73, %c7] : memref<2x9xf32, #tpu.memory_space<smem>>
      %75 = vector.broadcast %74 : f32 to vector<16x16xf32>
      %76 = arith.mulf %64, %75 : vector<16x16xf32>
      %77 = arith.addf %72, %76 : vector<16x16xf32>
      %78 = arith.index_cast %6 : i32 to index
      %c8 = arith.constant 8 : index
      %79 = memref.load %arg3[%78, %c8] : memref<2x9xf32, #tpu.memory_space<smem>>
      %cst_25 = arith.constant 0.000000e+00 : f32
      %80 = vector.broadcast %cst_25 : f32 to vector<16x1xf32>
      %81 = vector.extract_strided_slice %64 {offsets = [0, 1], sizes = [16, 15], strides = [1, 1]} : vector<16x16xf32> to vector<16x15xf32>
      %82 = tpu.concatenate %81, %80 in 1 : vector<16x15xf32>, vector<16x1xf32> -> vector<16x16xf32>
      %83 = vector.broadcast %79 : f32 to vector<16x16xf32>
      %84 = arith.mulf %82, %83 : vector<16x16xf32>
      %85 = arith.addf %77, %84 : vector<16x16xf32>
      %c0_26 = arith.constant 0 : index
      %86 = arith.index_cast %arg6 : i32 to index
      %87 = arith.index_cast %12 : i32 to index
      %c0_27 = arith.constant 0 : index
      %88 = vector.load %arg4[%c0_26, %86, %87, %c0_27] : memref<1x2x16x16xf32, #tpu.memory_space<vmem>>, vector<1x1x16x16xf32>
      %89 = vector.shape_cast %88 : vector<1x1x16x16xf32> to vector<16x16xf32>
      %90 = vector.shape_cast %85 : vector<16x16xf32> to vector<1x1x16x16xf32>
      tpu.vector_store %arg4[%c0_26, %86, %87, %c0_27], %90 {strides = array<i32>} : memref<1x2x16x16xf32, #tpu.memory_space<vmem>>, vector<1x1x16x16xf32>,
      %c1_i32_28 = arith.constant 1 : i32
    }
    %c2_i32_3 = arith.constant 2 : i32
    return
  }
  func.func @transform_0(%arg0: i32, %arg1: i32) -> (i32, i32, i32, i32) {
    %c0_i32 = arith.constant 0 : i32
    %c0_i32_0 = arith.constant 0 : i32
    %c0_i32_1 = arith.constant 0 : i32
    return %arg0, %arg1, %c0_i32, %c0_i32_0 : i32, i32, i32, i32
  }
  func.func @transform_1(%arg0: i32, %arg1: i32) -> (i32, i32) {
    %c0_i32 = arith.constant 0 : i32
    %c0_i32_0 = arith.constant 0 : i32
    %c0_i32_1 = arith.constant 0 : i32
    return %c0_i32, %c0_i32_0 : i32, i32
  }
  func.func @transform_2(%arg0: i32, %arg1: i32) -> (i32, i32, i32, i32) {
    %c0_i32 = arith.constant 0 : i32
    %c0_i32_0 = arith.constant 0 : i32
    %c0_i32_1 = arith.constant 0 : i32
    return %arg0, %arg1, %c0_i32, %c0_i32_0 : i32, i32, i32, i32
  }
}

</mosaic_0001>

<llo_original>
// kernel: tpu_custom_call.1
$region0: #{tpu_custom_call.1}
  #allocation0 [shape = 'u32[]', space=smem, size = 0x4, offset = 0x4, fixed_abs, tag = 'smem constant byte address 0x4 - core index']
  #allocation1 [shape = 'u32[144,128]{1,0:T(1,128)}', space=vmem, size = 0x12000, scoped, tag = 'internal scratch']
  #allocation2 [shape = 'f32[18,16]{1,0:T(8,128)}', space=vmem, size = 0x3000, scoped, tag = 'scratch operand']
  %s0 = inlined_call_operand.hbm [shape: f32[2,2,16,16], index: 0, kind: input, shape index: {}]
  %s1 = inlined_call_operand.hbm [shape: f32[2,9], index: 1, kind: input, shape index: {}]
  %s2 = inlined_call_operand.hbm [shape: f32[2,2,16,16], index: 2, kind: output, shape index: {}]
  %s3 = sld [smem:[#allocation0]]
  $region56: #{tpu_custom_call.1} parent=0
    _
  %s5 = ssub.s32 1, %s3
  %s6 = scalar_select 0, %s5, %s3
  $region1: #{tpu_custom_call.1} parent=0
    #allocation3 [shape = 'u8[32768]{0}', space=vmem, size = 0x8000, scoped, tag = 'input window, operand 0']
    #allocation4 [shape = 's32[2]{0}', space=sflag, size = 0x8, scoped, tag = 'scoped memory for tpu_custom_call.1']
    #allocation5 [shape = 's32[2]{0}', space=sflag, size = 0x8, scoped, tag = 'scoped memory for tpu_custom_call.1']
    #allocation6 [shape = 's32[2]{0}', space=sflag, size = 0x8, scoped, tag = 'scoped memory for tpu_custom_call.1']
    #allocation7 [shape = 'u8[1024]{0}', space=smem, size = 0x400, scoped, tag = 'input window, operand 1, single buffered']
    #allocation8 [shape = 'u8[32768]{0}', space=vmem, size = 0x8000, scoped, tag = 'output window, operand 0']
    %7 = vsyncpa [#allocation4], 0
    %s8 = scalar_lea.sflag [#allocation4], 1
    %9 = vsyncpa %s8, 0
    %10 = vsyncpa [#allocation6], 0
    %11 = vsyncpa [#allocation5], 0
    %s12 = scalar_lea.sflag [#allocation5], 1
    %13 = vsyncpa %s12, 0
    loop: start=0, step=1, limit=4
    $region2: #{tpu_custom_call.1} parent=1 // loop_pre_header
      _
    $region3: #{tpu_custom_call.1} parent=1 // loop_header
      %s15 = sphi 0, %s19
      %p16 = scmp.ge.s32.totalorder %s15, 4
      %s22 = sphi 0, %s34
      %s23 = sphi 0, %s30
      %s24 = sphi 0, %s22
      %s25 = sphi 0, %s23
      %s26 = sphi 0, %s24
      %s27 = sphi 0, %s25
      %s39 = sphi 0, %s41
      %s42 = sphi 0, %s39
      %s43 = sphi 0, %s42
      %s59 = sphi 0, %s43
      %s63 = sphi 0, %s63
      %s65 = sphi 0, %s63
      %s66 = sphi 0, %s65
      %s80 = sphi 0, %s66
      %s88 = sphi 0, %s90
      %s91 = sphi 0, %s88
      %s92 = sphi 0, %s91
      %s108 = sphi 0, %s92
    $region4: #{tpu_custom_call.1} parent=1 // loop_header_branch
      %18 = sbr.rel (%p16) target = $region8
    $region5: #{tpu_custom_call.1} parent=1 // loop_body
      %s20 = ssub.s32 %s15, 1
      %s21 = ssub.s32 %s15, 2
      %s28 = sadd.s32 1, %s23
      %p29 = scmp.ge.s32.totalorder %s28, 1
      %s30 = scalar_select %p29, 0, %s28
      %s31 = sadd.s32 1, %s22
      %s32 = scalar_select %p29, %s31, %s22
      %p33 = scmp.ge.s32.totalorder %s32, 2
      %s34 = scalar_select %p33, 0, %s32
      %s35 = ssub.s32 %s22, %s34
      %s36 = ssub.s32 %s23, %s30
      %s37 = sor.u32 %s35, %s36
      %p38 = scmp.eq.s32.totalorder %s37, 0
      %s40 = sadd.s32 %s39, 1
      %s41 = scalar_select %p38, %s39, %s40
      %p44 = pneg %p38
      %p45 = scmp.eq.s32.totalorder %s15, 1
      %p46 = por %p44, %p45
      %p47 = scmp.ne.s32.totalorder %s39, %s42
      %p48 = scmp.eq.s32.totalorder %s15, 0
      %p49 = por %p47, %p48
      %p50 = scmp.ne.s32.totalorder %s39, %s42
      %p51 = scmp.eq.s32.totalorder %s20, 1
      %p52 = por %p50, %p51
      %p53 = scmp.ne.s32.totalorder %s42, %s43
      %p54 = scmp.eq.s32.totalorder %s20, 0
      %p55 = por %p53, %p54
      %p56 = scmp.ne.s32.totalorder %s42, %s43
      %p57 = scmp.eq.s32.totalorder %s21, 1
      %p58 = por %p56, %p57
      %p60 = scmp.ne.s32.totalorder %s43, %s59
      %p61 = scmp.eq.s32.totalorder %s21, 0
      %p62 = por %p60, %p61
      %s64 = sadd.s32 %s63, 1
      %p67 = scmp.eq.s32.totalorder %s15, 1
      %p68 = scmp.ne.s32.totalorder %s63, %s65
      %p69 = scmp.eq.s32.totalorder %s15, 0
      %p70 = por %p68, %p69
      %p71 = scmp.ne.s32.totalorder %s63, %s65
      %p72 = scmp.eq.s32.totalorder %s20, 1
      %p73 = por %p71, %p72
      %p74 = scmp.ne.s32.totalorder %s65, %s66
      %p75 = scmp.eq.s32.totalorder %s20, 0
      %p76 = por %p74, %p75
      %p77 = scmp.ne.s32.totalorder %s65, %s66
      %p78 = scmp.eq.s32.totalorder %s21, 1
      %p79 = por %p77, %p78
      %p81 = scmp.ne.s32.totalorder %s66, %s80
      %p82 = scmp.eq.s32.totalorder %s21, 0
      %p83 = por %p81, %p82
      %s84 = ssub.s32 %s22, %s34
      %s85 = ssub.s32 %s23, %s30
      %s86 = sor.u32 %s84, %s85
      %p87 = scmp.eq.s32.totalorder %s86, 0
      %s89 = sadd.s32 %s88, 1
      %s90 = scalar_select %p87, %s88, %s89
      %p93 = pneg %p87
      %p94 = scmp.eq.s32.totalorder %s15, 1
      %p95 = por %p93, %p94
      %p96 = scmp.ne.s32.totalorder %s88, %s91
      %p97 = scmp.eq.s32.totalorder %s15, 0
      %p98 = por %p96, %p97
      %p99 = scmp.ne.s32.totalorder %s88, %s91
      %p100 = scmp.eq.s32.totalorder %s20, 1
      %p101 = por %p99, %p100
      %p102 = scmp.ne.s32.totalorder %s91, %s92
      %p103 = scmp.eq.s32.totalorder %s20, 0
      %p104 = por %p102, %p103
      %p105 = scmp.ne.s32.totalorder %s91, %s92
      %p106 = scmp.eq.s32.totalorder %s21, 1
      %p107 = por %p105, %p106
      %p109 = scmp.ne.s32.totalorder %s92, %s108
      %p110 = scmp.eq.s32.totalorder %s21, 0
      %p111 = por %p109, %p110
      %p112 = scmp.le.s32.totalorder 1, %s15
      %p113 = scmp.lt.s32.totalorder %s15, 3
      %p114 = pnand %p112, %p113
      %p115 = pneg %p114
      // Predicated region
      $region9: #{tpu_custom_call.1} parent=5 // pred_check
        _
      $region10: #{tpu_custom_call.1} parent=5 // pred_check_branch
        %117 = sbr.rel (%p114) target = $region12
      $region11: #{tpu_custom_call.1} parent=5 // pred_region
        %s118 = ssub.s32 %s15, 1
        // Predicated region
        $region13: #{tpu_custom_call.1} parent=11 // pred_check
          %p119 = pneg %p76
        $region14: #{tpu_custom_call.1} parent=11 // pred_check_branch
          %121 = sbr.rel (%p119) target = $region16
        $region15: #{tpu_custom_call.1} parent=11 // pred_region
          %s123 = ssub.s32 32, 32
          %124 = vsyncadd [#allocation6], %s123
          %127 = dma.hbm_to_smem %s1, 32, [#allocation7], [#allocation6]
        $region16: #{tpu_custom_call.1} parent=11 // pred_fallthru
          _
      $region12: #{tpu_custom_call.1} parent=5 // pred_fallthru
        _
      %p128 = scmp.lt.s32.totalorder %s15, 2
      // Predicated region
      $region17: #{tpu_custom_call.1} parent=5 // pred_check
        %p129 = pneg %p128
      $region18: #{tpu_custom_call.1} parent=5 // pred_check_branch
        %131 = sbr.rel (%p129) target = $region20
      $region19: #{tpu_custom_call.1} parent=5 // pred_region
        // Predicated region
        $region21: #{tpu_custom_call.1} parent=19 // pred_check
          %p132 = pneg %p49
        $region22: #{tpu_custom_call.1} parent=19 // pred_check_branch
          %134 = sbr.rel (%p132) target = $region24
        $region23: #{tpu_custom_call.1} parent=19 // pred_region
          %s135 = sand.u32 %s39, 1
          %s136 = scalar_lea.sflag [#allocation4], %s135
          %s137 = sand.u32 %s39, 1
          %s138 = smul.addr %s137, 32
          %s139 = scalar_lea.vmem [#allocation3], %s138
          %s140 = smul.u32 2, %s23
          %s142 = ssub.s32 512, 512
          %143 = vsyncadd %s136, %s142
          %s144 = smul.addr %s140, 2
          %s145 = smul.addr %s22, 4
          %s146 = sadd.s32 %s144, %s145
          %s147 = smul.addr %s146, 128
          %s148 = scalar_lea.hbm %s0, %s147
          %s149 = sshll.u32 %s139, 4
          %s150 = int_to_ptr.vmem [resolvable:$true] %s149
          %155 = dma.hbm_to_vmem [thread:$0]  %s148, 512, %s150, %s136, 128, 128, 8
        $region24: #{tpu_custom_call.1} parent=19 // pred_fallthru
          _
      $region20: #{tpu_custom_call.1} parent=5 // pred_fallthru
        _
      %p156 = scmp.le.s32.totalorder 1, %s15
      %p157 = scmp.lt.s32.totalorder %s15, 3
      %p158 = pnand %p156, %p157
      %p159 = pneg %p158
      // Predicated region
      $region25: #{tpu_custom_call.1} parent=5 // pred_check
        _
      $region26: #{tpu_custom_call.1} parent=5 // pred_check_branch
        %161 = sbr.rel (%p158) target = $region28
      $region27: #{tpu_custom_call.1} parent=5 // pred_region
        %s162 = ssub.s32 %s15, 1
        %s163 = sand.u32 %s42, 1
        %s164 = scalar_lea.sflag [#allocation4], %s163
        %s165 = sand.u32 %s42, 1
        %s166 = smul.addr %s165, 32
        %s167 = scalar_lea.vmem [#allocation3], %s166
        // Predicated region
        $region29: #{tpu_custom_call.1} parent=27 // pred_check
          %p168 = pneg %p55
        $region30: #{tpu_custom_call.1} parent=27 // pred_check_branch
          %170 = sbr.rel (%p168) target = $region32
        $region31: #{tpu_custom_call.1} parent=27 // pred_region
          %171 = dma.done %s164, 512
        $region32: #{tpu_custom_call.1} parent=27 // pred_fallthru
          _
        // Predicated region
        $region33: #{tpu_custom_call.1} parent=27 // pred_check
          %p172 = pneg %p76
        $region34: #{tpu_custom_call.1} parent=27 // pred_check_branch
          %174 = sbr.rel (%p172) target = $region36
        $region35: #{tpu_custom_call.1} parent=27 // pred_region
          %175 = dma.done [#allocation6], 32
        $region36: #{tpu_custom_call.1} parent=27 // pred_fallthru
          _
        %176 = sfence
        %s177 = sand.u32 %s42, 1
        %s178 = scalar_lea.sflag [#allocation4], %s177
        %s179 = sand.u32 %s42, 1
        %s180 = smul.addr %s179, 32
        %s181 = scalar_lea.vmem [#allocation3], %s180
        %p182 = pneg %p55
        %p183 = pneg %p52
        %p184 = pneg %p76
        %p185 = pneg %p73
        %p186 = pneg %p104
        %p187 = pneg %p101
        %s188 = sand.u32 %s91, 1
        %s189 = scalar_lea.sflag [#allocation5], %s188
        %s190 = sand.u32 %s91, 1
        %s191 = smul.addr %s190, 32
        %s192 = scalar_lea.vmem [#allocation8], %s191
        %s193 = smul.u32 2, %s25
        %s194 = smul.u32 2, %s25
        %vm195 = vcmask 122880
        %196 = vst.msk [vmem:[#allocation2] sm:$0x1] %vm195, 0.0
        %197 = vst.msk [vmem:[#allocation2 + $0x11] sm:$0x1] %vm195, 0.0
        loop: start=0, step=1, limit=2
        $region37: #{tpu_custom_call.1} parent=27 // loop_pre_header
          _
        $region38: #{tpu_custom_call.1} parent=27 // loop_header
          %s199 = sphi 0, %s203
          %p200 = scmp.ge.s32.totalorder %s199, 2
        $region39: #{tpu_custom_call.1} parent=27 // loop_header_branch
          %202 = sbr.rel (%p200) target = $region43
        $region40: #{tpu_custom_call.1} parent=27 // loop_body
          %s204 = smul.u32 %s25, 2
          %s205 = sadd.s32 %s204, %s199
          %s206 = smul.u32 %s199, 16
          %s207 = scalar_lea.vmem %s167, %s206 [#allocation3]
          %v208 = vld [vmem:[%s207] sm:$0xff]
          %v209 = vld [vmem:[%s207 + $0x8] sm:$0xff]
          %vm210 = vcmask 130048
          %211 = vst.msk [vmem:[#allocation2 + $0x1] sm:$0xff] %vm210, %v208
          %212 = vst.msk [vmem:[#allocation2 + $0x9] sm:$0xff] %vm210, %v209
          %v213 = vld [vmem:[#allocation2] sm:$0xff]
          %v214 = vld [vmem:[#allocation2 + $0x8] sm:$0xff]
          %s215 = smul.u32 %s205, 128
          %s216 = sld [smem:[#allocation7 + %s215]]
          %219 = vrot.lane.b32.xlu0 %v213, 1
          %v220 = vpop.permute.xlu0 %219
          %221 = vrot.lane.b32.xlu0 %v214, 1
          %v222 = vpop.permute.xlu0 %221
          %vm225 = vcmask 7168
          %v226 = vsel %vm225, 0.0, %v220
          %v227 = vsel %vm225, 0.0, %v222
          %v228 = vstv %s216
          %v229 = vmul.f32 %v226, %v228
          %v230 = vmul.f32 %v227, %v228
          %v231 = vadd.f32 %v229, 0.0
          %v232 = vadd.f32 %v230, 0.0
          %s233 = sadd.s32 %s215, 1
          %s234 = sld [smem:[#allocation7 + %s233]]
          %v235 = vstv %s234
          %v236 = vmul.f32 %v213, %v235
          %v237 = vmul.f32 %v214, %v235
          %v238 = vadd.f32 %v231, %v236
          %v239 = vadd.f32 %v232, %v237
          %s240 = sadd.s32 %s215, 2
          %s241 = sld [smem:[#allocation7 + %s240]]
          %242 = vrot.lane.b32.xlu0 %v213, 127
          %v243 = vpop.permute.xlu0 %242
          %244 = vrot.lane.b32.xlu0 %v214, 127
          %v245 = vpop.permute.xlu0 %244
          %vm248 = vcmask 121856
          %v249 = vsel %vm248, %v243, 0.0
          %v250 = vsel %vm248, %v245, 0.0
          %v251 = vstv %s241
          %v252 = vmul.f32 %v249, %v251
          %v253 = vmul.f32 %v250, %v251
          %v254 = vadd.f32 %v238, %v252
          %v255 = vadd.f32 %v239, %v253
          %v256 = vld [vmem:[#allocation2 + $0x1] sm:$0xff]
          %v257 = vld [vmem:[#allocation2 + $0x9] sm:$0xff]
          %s258 = sadd.s32 %s215, 3
          %s259 = sld [smem:[#allocation7 + %s258]]
          %262 = vrot.lane.b32.xlu0 %v256, 1
          %v263 = vpop.permute.xlu0 %262
          %264 = vrot.lane.b32.xlu0 %v257, 1
          %v265 = vpop.permute.xlu0 %264
          %v268 = vsel %vm225, 0.0, %v263
          %v269 = vsel %vm225, 0.0, %v265
          %v270 = vstv %s259
          %v271 = vmul.f32 %v268, %v270
          %v272 = vmul.f32 %v269, %v270
          %v273 = vadd.f32 %v254, %v271
          %v274 = vadd.f32 %v255, %v272
          %s275 = sadd.s32 %s215, 4
          %s276 = sld [smem:[#allocation7 + %s275]]
          %v277 = vstv %s276
          %v278 = vmul.f32 %v256, %v277
          %v279 = vmul.f32 %v257, %v277
          %v280 = vadd.f32 %v273, %v278
          %v281 = vadd.f32 %v274, %v279
          %s282 = sadd.s32 %s215, 5
          %s283 = sld [smem:[#allocation7 + %s282]]
          %284 = vrot.lane.b32.xlu0 %v256, 127
          %v285 = vpop.permute.xlu0 %284
          %286 = vrot.lane.b32.xlu0 %v257, 127
          %v287 = vpop.permute.xlu0 %286
          %v290 = vsel %vm248, %v285, 0.0
          %v291 = vsel %vm248, %v287, 0.0
          %v292 = vstv %s283
          %v293 = vmul.f32 %v290, %v292
          %v294 = vmul.f32 %v291, %v292
          %v295 = vadd.f32 %v280, %v293
          %v296 = vadd.f32 %v281, %v294
          %v297 = vld [vmem:[#allocation2 + $0x2] sm:$0xff]
          %v298 = vld [vmem:[#allocation2 + $0xa] sm:$0xff]
          %s299 = sadd.s32 %s215, 6
          %s300 = sld [smem:[#allocation7 + %s299]]
          %303 = vrot.lane.b32.xlu0 %v297, 1
          %v304 = vpop.permute.xlu0 %303
          %305 = vrot.lane.b32.xlu0 %v298, 1
          %v306 = vpop.permute.xlu0 %305
          %v309 = vsel %vm225, 0.0, %v304
          %v310 = vsel %vm225, 0.0, %v306
          %v311 = vstv %s300
          %v312 = vmul.f32 %v309, %v311
          %v313 = vmul.f32 %v310, %v311
          %v314 = vadd.f32 %v295, %v312
          %v315 = vadd.f32 %v296, %v313
          %s316 = sadd.s32 %s215, 7
          %s317 = sld [smem:[#allocation7 + %s316]]
          %v318 = vstv %s317
          %v319 = vmul.f32 %v297, %v318
          %v320 = vmul.f32 %v298, %v318
          %v321 = vadd.f32 %v314, %v319
          %v322 = vadd.f32 %v315, %v320
          %s323 = sadd.s32 %s215, 8
          %s324 = sld [smem:[#allocation7 + %s323]]
          %325 = vrot.lane.b32.xlu0 %v297, 127
          %v326 = vpop.permute.xlu0 %325
          %327 = vrot.lane.b32.xlu0 %v298, 127
          %v328 = vpop.permute.xlu0 %327
          %v331 = vsel %vm248, %v326, 0.0
          %v332 = vsel %vm248, %v328, 0.0
          %v333 = vstv %s324
          %v334 = vmul.f32 %v331, %v333
          %v335 = vmul.f32 %v332, %v333
          %v336 = vadd.f32 %v321, %v334
          %v337 = vadd.f32 %v322, %v335
          %s338 = scalar_lea.vmem %s192, %s206 [#allocation8]
          %339 = vst.msk [vmem:[%s338] sm:$0xff] %vm210, %v336
          %340 = vst.msk [vmem:[%s338 + $0x8] sm:$0xff] %vm210, %v337
        $region41: #{tpu_custom_call.1} parent=27 // loop_footer
          %s203 = sadd.s32 1, %s199
        $region42: #{tpu_custom_call.1} parent=27 // loop_footer_branch
          %198 = sbr.rel target = $region38
        $region43: #{tpu_custom_call.1} parent=27 // loop_exit
          _
        %s341 = sand.u32 %s91, 1
        %s342 = scalar_lea.sflag [#allocation5], %s341
        %s343 = sand.u32 %s91, 1
        %s344 = smul.addr %s343, 32
        %s345 = scalar_lea.vmem [#allocation8], %s344
        // Predicated region
        $region44: #{tpu_custom_call.1} parent=27 // pred_check
          %p346 = pneg %p101
        $region45: #{tpu_custom_call.1} parent=27 // pred_check_branch
          %348 = sbr.rel (%p346) target = $region47
        $region46: #{tpu_custom_call.1} parent=27 // pred_region
          %s349 = smul.u32 2, %s25
          %s351 = ssub.s32 512, 512
          %352 = vsyncadd %s342, %s351
          %s353 = smul.addr %s349, 2
          %s354 = smul.addr %s24, 4
          %s355 = sadd.s32 %s353, %s354
          %s356 = smul.addr %s355, 128
          %s357 = scalar_lea.hbm %s2, %s356
          %s358 = sshll.u32 %s345, 4
          %s359 = int_to_ptr.vmem [resolvable:$true] %s358
          %364 = dma.vmem_to_hbm [thread:$0]  %s359, 512, %s357, %s342, 128, 128, 8
        $region47: #{tpu_custom_call.1} parent=27 // pred_fallthru
          _
      $region28: #{tpu_custom_call.1} parent=5 // pred_fallthru
        _
      %p365 = scmp.le.s32.totalorder 2, %s15
      // Predicated region
      $region48: #{tpu_custom_call.1} parent=5 // pred_check
        %p366 = pneg %p365
      $region49: #{tpu_custom_call.1} parent=5 // pred_check_branch
        %368 = sbr.rel (%p366) target = $region51
      $region50: #{tpu_custom_call.1} parent=5 // pred_region
        %s369 = ssub.s32 %s15, 2
        // Predicated region
        $region52: #{tpu_custom_call.1} parent=50 // pred_check
          %p370 = pneg %p107
        $region53: #{tpu_custom_call.1} parent=50 // pred_check_branch
          %372 = sbr.rel (%p370) target = $region55
        $region54: #{tpu_custom_call.1} parent=50 // pred_region
          %s373 = sand.u32 %s92, 1
          %s374 = scalar_lea.sflag [#allocation5], %s373
          %s375 = sand.u32 %s92, 1
          %s376 = smul.addr %s375, 32
          %s377 = scalar_lea.vmem [#allocation8], %s376
          %378 = dma.done %s374, 512
        $region55: #{tpu_custom_call.1} parent=50 // pred_fallthru
          _
      $region51: #{tpu_custom_call.1} parent=5 // pred_fallthru
        _
    $region6: #{tpu_custom_call.1} parent=1 // loop_footer
      %s19 = sadd.s32 1, %s15
    $region7: #{tpu_custom_call.1} parent=1 // loop_footer_branch
      %14 = sbr.rel target = $region3
    $region8: #{tpu_custom_call.1} parent=1 // loop_exit
      _
    %379 = vsyncpa [#allocation4], 1
    %s380 = scalar_lea.sflag [#allocation4], 1
    %381 = vsyncpa %s380, 1
    %382 = vsyncpa [#allocation5], 1
    %s383 = scalar_lea.sflag [#allocation5], 1
    %384 = vsyncpa %s383, 1
    %385 = vsyncpa [#allocation6], 1
    %s386 = scalar_lea.sflag [#allocation6], 1
    %387 = vsyncpa %s386, 1

</llo_original>
